<compile_context>
chip_gen: v7x
topology: tpu7x:2x2x1
jax: 0.10.0
libtpu: 0.0.40
codegen_flags: <defaults>
</compile_context>

<pallas_src>
import numpy as np
import jax
import jax.numpy as jnp
from jax.experimental import pallas as pl
from jax.experimental.pallas import tpu as pltpu

_LANE = 128


def _multitask_kernel(o_ref, l_ref, wr_ref, wc_ref, out_ref, acc_ref):
    step = pl.program_id(0)

    @pl.when(step == 0)
    def _init():
        acc_ref[...] = jnp.zeros_like(acc_ref)

    o = o_ref[...].astype(jnp.float32)
    l = l_ref[...].astype(jnp.float32)
    wr = wr_ref[...]   # [1, C]: reg mask * (reg_weight / (B * n_reg))
    wc = wc_ref[...]   # [1, C]: cls mask * (cls_weight / (B * n_cls))

    diff = o - l
    # numerically-stable BCEWithLogits: max(x,0) - x*y + log1p(exp(-|x|))
    bce = jnp.maximum(o, 0.0) - o * l + jnp.log1p(jnp.exp(-jnp.abs(o)))

    # Single fused masked reduction per tile; mean scales + task weights are
    # already folded into wr / wc, so sums accumulate correctly across tiles.
    acc_ref[...] += jnp.sum(diff * diff * wr + bce * wc, keepdims=True)

    @pl.when(step == pl.num_programs(0) - 1)
    def _finalize():
        out_ref[...] = acc_ref[...]


def _pick_tile_rows(n_rows: int, cap: int) -> int:
    """Largest divisor of n_rows <= cap that is a multiple of 8 (or n_rows)."""
    cap = max(1, min(cap, n_rows))
    for t in range(cap, 0, -1):
        if n_rows % t == 0 and (t % 8 == 0 or t == n_rows):
            return t
    return n_rows


def multi_task_loss(outputs: jax.Array,
                    labels: jax.Array,
                    regression_tasks,
                    classification_tasks,
                    regression_weight: float = 1.0,
                    classification_weight: float = 1.0,
                    max_tile_rows: int = 1024) -> jax.Array:
    """JAX/Pallas equivalent of MultiTaskLoss.forward (scalar f32)."""
    assert outputs.ndim == 2 and outputs.shape == labels.shape
    B, T = outputs.shape
    n_reg = len(regression_tasks)
    n_cls = len(classification_tasks)

    # Static per-task masks (compile-time Python lists -> no dynamic gather;
    # out-of-range indices raise here, matching PyTorch indexing).
    reg_mask = np.zeros((T,), np.float32)
    cls_mask = np.zeros((T,), np.float32)
    reg_mask[list(regression_tasks)] = 1.0
    cls_mask[list(classification_tasks)] = 1.0

    # Empty task list guard: torch's mean-reduction loss on an empty slice
    # yields NaN; here an empty branch simply contributes 0.
    scale_r = (regression_weight / (B * n_reg)) if n_reg > 0 else 0.0
    scale_c = (classification_weight / (B * n_cls)) if n_cls > 0 else 0.0
    w_reg = reg_mask * np.float32(scale_r)
    w_cls = cls_mask * np.float32(scale_c)

    # Lane-dense layout: flatten [B, T] -> [B*T/128, 128] (free row-major
    # reshape) when possible and tile the per-task masks across the lanes.
    if (B * T) % _LANE == 0 and _LANE % T == 0:
        C = _LANE
        R = (B * T) // _LANE
        reps = _LANE // T
        w_reg_row = np.tile(w_reg, reps)[None, :]
        w_cls_row = np.tile(w_cls, reps)[None, :]
        o2d = outputs.reshape(R, C)
        l2d = labels.reshape(R, C)
    else:
        # TODO(synk): fallback keeps T on the lane axis (low lane occupancy);
        # could pad/flatten instead for large, non-128-aligned inputs.
        C = T
        R = B
        w_reg_row = w_reg[None, :]
        w_cls_row = w_cls[None, :]
        o2d = outputs
        l2d = labels

    tile_r = _pick_tile_rows(R, max_tile_rows)
    grid = (R // tile_r,)

    out = pl.pallas_call(
        _multitask_kernel,
        out_shape=jax.ShapeDtypeStruct((1, 1), jnp.float32),
        grid_spec=pltpu.PrefetchScalarGridSpec(
            num_scalar_prefetch=0,
            grid=grid,
            in_specs=[
                pl.BlockSpec((tile_r, C), lambda i: (i, 0)),
                pl.BlockSpec((tile_r, C), lambda i: (i, 0)),
                pl.BlockSpec((1, C), lambda i: (0, 0)),
                pl.BlockSpec((1, C), lambda i: (0, 0)),
            ],
            out_specs=pl.BlockSpec((1, 1), lambda i: (0, 0)),
            scratch_shapes=[pltpu.VMEM((1, 1), jnp.float32)],
        ),
        # Single sequential accumulation axis.
        # TODO(synk): on v7x, add a leading 'parallel' axis of size 2 with
        # per-core partial sums combined in the wrapper to use both TCs.
        compiler_params=pltpu.CompilerParams(
            dimension_semantics=("arbitrary",)),
    )(o2d, l2d, jnp.asarray(w_reg_row), jnp.asarray(w_cls_row))

    return out[0, 0]


def _reference(outputs, labels, reg_tasks, cls_tasks, rw, cw):
    o_r = outputs[:, reg_tasks]
    l_r = labels[:, reg_tasks]
    mse = jnp.mean((o_r - l_r) ** 2)
    o_c = outputs[:, cls_tasks]
    l_c = labels[:, cls_tasks]
    bce = jnp.mean(jnp.maximum(o_c, 0.0) - o_c * l_c
                   + jnp.log1p(jnp.exp(-jnp.abs(o_c))))
    return mse * rw + bce * cw


if __name__ == "__main__":
    regression_tasks = [0, 2, 4]
    classification_tasks = [1, 3, 5, 6, 7]
    regression_weight = 1.0
    classification_weight = 0.5
    num_tasks = 8

    key = jax.random.PRNGKey(0)
    cls_cols = np.asarray(classification_tasks)
    reg_cols = np.asarray(regression_tasks)

    # Case 1 (batch=8): non-128-aligned fallback layout, single grid step.
    # Case 2 (batch=2048, max_tile_rows=64): lane-dense [128,128] layout,
    #         2-step accumulation grid.
    for batch, max_tile in [(8, 1024), (2048, 64)]:
        key, k1, k2, k3 = jax.random.split(key, 4)
        outputs = jax.random.normal(k1, (batch, num_tasks), dtype=jnp.float32)
        reg_labels = jax.random.normal(k2, (batch, num_tasks), dtype=jnp.float32)
        cls_labels = jax.random.bernoulli(k3, 0.5, (batch, num_tasks)).astype(jnp.float32)
        labels = reg_labels.at[:, cls_cols].set(cls_labels[:, cls_cols])

        loss = multi_task_loss(outputs, labels,
                               regression_tasks, classification_tasks,
                               regression_weight, classification_weight,
                               max_tile_rows=max_tile)
        loss = jax.block_until_ready(loss)

        ref = _reference(outputs, labels, reg_cols, cls_cols,
                         regression_weight, classification_weight)
        assert jnp.allclose(loss, ref, rtol=1e-4, atol=1e-6), (batch, loss, ref)

    print("KERNEL_OK")
</pallas_src>

<mosaic_0001>
module attributes {stable_mosaic.version = 11 : i64} {
  func.func @_multitask_kernel(%arg0: i32, %arg1: memref<8x8xf32, #tpu.memory_space<vmem>>, %arg2: memref<8x8xf32, #tpu.memory_space<vmem>>, %arg3: memref<1x8xf32, #tpu.memory_space<vmem>>, %arg4: memref<1x8xf32, #tpu.memory_space<vmem>>, %arg5: memref<1x1xf32, #tpu.memory_space<vmem>>, %arg6: memref<1x1xf32, #tpu.memory_space<vmem>>) attributes {dimension_semantics = [#tpu.dimension_semantics<arbitrary>], iteration_bounds = array<i64: 1>, scalar_prefetch = 0 : i64, scratch_operands = 1 : i64, tpu.core_type = #tpu.core_type<tc>, window_params = [{transform_indices = @transform_0, window_bounds = array<i64: 8, 8>}, {transform_indices = @transform_1, window_bounds = array<i64: 8, 8>}, {pipeline_mode = #tpu.pipeline_mode<synchronous>, transform_indices = @transform_2, window_bounds = array<i64: 1, 8>}, {pipeline_mode = #tpu.pipeline_mode<synchronous>, transform_indices = @transform_3, window_bounds = array<i64: 1, 8>}, {pipeline_mode = #tpu.pipeline_mode<synchronous>, transform_indices = @transform_4, window_bounds = array<i64: 1, 1>}]} {
    %c0_i32 = arith.constant 0 : i32
    %0 = arith.cmpi eq, %arg0, %c0_i32 : i32
    %1 = arith.extui %0 : i1 to i32
    %c0_i32_0 = arith.constant 0 : i32
    %2 = arith.cmpi ne, %1, %c0_i32_0 : i32
    scf.if %2 {
      %cst_16 = arith.constant 0.000000e+00 : f32
      %35 = vector.broadcast %cst_16 : f32 to vector<1x1xf32>
      %c0_17 = arith.constant 0 : index
      %c0_18 = arith.constant 0 : index
      %36 = vector.load %arg6[%c0_17, %c0_18] : memref<1x1xf32, #tpu.memory_space<vmem>>, vector<1x1xf32>
      tpu.vector_store %arg6[%c0_17, %c0_18], %35 {strides = array<i32>} : memref<1x1xf32, #tpu.memory_space<vmem>>, vector<1x1xf32>,
    } else {
    }
    %c0 = arith.constant 0 : index
    %c0_1 = arith.constant 0 : index
    %3 = vector.load %arg1[%c0, %c0_1] : memref<8x8xf32, #tpu.memory_space<vmem>>, vector<8x8xf32>
    %c0_2 = arith.constant 0 : index
    %c0_3 = arith.constant 0 : index
    %4 = vector.load %arg2[%c0_2, %c0_3] : memref<8x8xf32, #tpu.memory_space<vmem>>, vector<8x8xf32>
    %c0_4 = arith.constant 0 : index
    %c0_5 = arith.constant 0 : index
    %5 = vector.load %arg3[%c0_4, %c0_5] : memref<1x8xf32, #tpu.memory_space<vmem>>, vector<1x8xf32>
    %c0_6 = arith.constant 0 : index
    %c0_7 = arith.constant 0 : index
    %6 = vector.load %arg4[%c0_6, %c0_7] : memref<1x8xf32, #tpu.memory_space<vmem>>, vector<1x8xf32>
    %7 = arith.subf %3, %4 : vector<8x8xf32>
    %cst = arith.constant 0.000000e+00 : f32
    %8 = vector.broadcast %cst : f32 to vector<8x8xf32>
    %9 = arith.maximumf %3, %8 : vector<8x8xf32>
    %10 = arith.mulf %3, %4 : vector<8x8xf32>
    %11 = arith.subf %9, %10 : vector<8x8xf32>
    %12 = math.absf %3 : vector<8x8xf32>
    %cst_8 = arith.constant 0.000000e+00 : f32
    %13 = vector.broadcast %cst_8 : f32 to vector<8x8xf32>
    %14 = arith.subf %13, %12 : vector<8x8xf32>
    %15 = math.exp %14 : vector<8x8xf32>
    %16 = math.log1p %15 : vector<8x8xf32>
    %17 = arith.addf %11, %16 : vector<8x8xf32>
    %c0_9 = arith.constant 0 : index
    %c0_10 = arith.constant 0 : index
    %18 = vector.load %arg6[%c0_9, %c0_10] : memref<1x1xf32, #tpu.memory_space<vmem>>, vector<1x1xf32>
    %19 = arith.mulf %7, %7 : vector<8x8xf32>
    %20 = vector.broadcast %5 : vector<1x8xf32> to vector<8x8xf32>
    %21 = arith.mulf %19, %20 : vector<8x8xf32>
    %22 = vector.broadcast %6 : vector<1x8xf32> to vector<8x8xf32>
    %23 = arith.mulf %17, %22 : vector<8x8xf32>
    %24 = arith.addf %21, %23 : vector<8x8xf32>
    %25 = vector.shape_cast %24 : vector<8x8xf32> to vector<1x8x8xf32>
    %cst_11 = arith.constant dense<0.000000e+00> : vector<1xf32>
    %26 = vector.multi_reduction <add>, %25, %cst_11 [1, 2] : vector<1x8x8xf32> to vector<1xf32>
    %27 = vector.shape_cast %26 : vector<1xf32> to vector<1x1x1xf32>
    %28 = vector.extract %27[0, 0, 0] : f32 from vector<1x1x1xf32>
    %29 = vector.broadcast %28 : f32 to vector<1x1xf32>
    %30 = arith.addf %18, %29 : vector<1x1xf32>
    %c0_12 = arith.constant 0 : index
    %c0_13 = arith.constant 0 : index
    %31 = vector.load %arg6[%c0_12, %c0_13] : memref<1x1xf32, #tpu.memory_space<vmem>>, vector<1x1xf32>
    tpu.vector_store %arg6[%c0_12, %c0_13], %30 {strides = array<i32>} : memref<1x1xf32, #tpu.memory_space<vmem>>, vector<1x1xf32>,
    %c0_i32_14 = arith.constant 0 : i32
    %32 = arith.cmpi eq, %arg0, %c0_i32_14 : i32
    %33 = arith.extui %32 : i1 to i32
    %c0_i32_15 = arith.constant 0 : i32
    %34 = arith.cmpi ne, %33, %c0_i32_15 : i32
    scf.if %34 {
      %c0_16 = arith.constant 0 : index
      %c0_17 = arith.constant 0 : index
      %35 = vector.load %arg6[%c0_16, %c0_17] : memref<1x1xf32, #tpu.memory_space<vmem>>, vector<1x1xf32>
      %c0_18 = arith.constant 0 : index
      %c0_19 = arith.constant 0 : index
      %36 = vector.load %arg5[%c0_18, %c0_19] : memref<1x1xf32, #tpu.memory_space<vmem>>, vector<1x1xf32>
      tpu.vector_store %arg5[%c0_18, %c0_19], %35 {strides = array<i32>} : memref<1x1xf32, #tpu.memory_space<vmem>>, vector<1x1xf32>,
    } else {
    }
    return
  }
  func.func @transform_0(%arg0: i32) -> (i32, i32) {
    %c0_i32 = arith.constant 0 : i32
    %c0_i32_0 = arith.constant 0 : i32
    return %arg0, %c0_i32 : i32, i32
  }
  func.func @transform_1(%arg0: i32) -> (i32, i32) {
    %c0_i32 = arith.constant 0 : i32
    %c0_i32_0 = arith.constant 0 : i32
    return %arg0, %c0_i32 : i32, i32
  }
  func.func @transform_2(%arg0: i32) -> (i32, i32) {
    %c0_i32 = arith.constant 0 : i32
    %c0_i32_0 = arith.constant 0 : i32
    %c0_i32_1 = arith.constant 0 : i32
    return %c0_i32, %c0_i32_0 : i32, i32
  }
  func.func @transform_3(%arg0: i32) -> (i32, i32) {
    %c0_i32 = arith.constant 0 : i32
    %c0_i32_0 = arith.constant 0 : i32
    %c0_i32_1 = arith.constant 0 : i32
    return %c0_i32, %c0_i32_0 : i32, i32
  }
  func.func @transform_4(%arg0: i32) -> (i32, i32) {
    %c0_i32 = arith.constant 0 : i32
    %c0_i32_0 = arith.constant 0 : i32
    %c0_i32_1 = arith.constant 0 : i32
    return %c0_i32, %c0_i32_0 : i32, i32
  }
}

</mosaic_0001>

<llo_original>
// kernel: tpu_custom_call.1
$region0: #{tpu_custom_call.1}
  #allocation0 [shape = 'u32[]', space=smem, size = 0x4, offset = 0x4, fixed_abs, tag = 'smem constant byte address 0x4 - core index']
  #allocation1 [shape = 'u32[144,128]{1,0:T(1,128)}', space=vmem, size = 0x12000, scoped, tag = 'internal scratch']
  #allocation2 [shape = 'f32[1,1]{1,0:T(1,128)}', space=vmem, size = 0x200, scoped, tag = 'scratch operand']
  %s0 = inlined_call_operand.hbm [shape: f32[8,8], index: 0, kind: input, shape index: {}]
  %s1 = inlined_call_operand.hbm [shape: f32[8,8], index: 1, kind: input, shape index: {}]
  %s2 = inlined_call_operand.vmem [shape: f32[1,8], index: 2, kind: input, shape index: {}]
  %s3 = inlined_call_operand.vmem [shape: f32[1,8], index: 3, kind: input, shape index: {}]
  %s4 = inlined_call_operand.hbm [shape: f32[1,1], index: 4, kind: output, shape index: {}]
  %s5 = sld [smem:[#allocation0]]
  $region42: #{tpu_custom_call.1} parent=0
    _
  %s7 = ssub.s32 1, %s5
  %s8 = scalar_select 0, %s7, %s5
  $region1: #{tpu_custom_call.1} parent=0
    #allocation3 [shape = 'u8[4096]{0}', space=vmem, size = 0x1000, scoped, tag = 'input window, operand 0, single buffered']
    #allocation4 [shape = 's32[1]{0}', space=sflag, size = 0x4, scoped, tag = 'scoped memory for tpu_custom_call.1']
    #allocation5 [shape = 's32[1]{0}', space=sflag, size = 0x4, scoped, tag = 'scoped memory for tpu_custom_call.1']
    #allocation6 [shape = 'u8[4096]{0}', space=vmem, size = 0x1000, scoped, tag = 'input window, operand 1, single buffered']
    #allocation7 [shape = 's32[1]{0}', space=sflag, size = 0x4, scoped, tag = 'scoped memory for tpu_custom_call.1']
    #allocation8 [shape = 'u8[512]{0}', space=vmem, size = 0x400, scoped, tag = 'output window, operand 0, single buffered']
    %9 = vsyncpa [#allocation4], 0
    %10 = vsyncpa [#allocation7], 0
    %11 = vsyncpa [#allocation5], 0
    // Predicated region
    $region2: #{tpu_custom_call.1} parent=1 // pred_check
      _
    $region3: #{tpu_custom_call.1} parent=1 // pred_check_branch
      %13 = sbr.rel (0) target = $region5
    $region4: #{tpu_custom_call.1} parent=1 // pred_region
      %s15 = ssub.s32 128, 128
      %16 = vsyncadd [#allocation4], %s15
      %s18 = sshll.u32 [#allocation3], 4
      %s19 = int_to_ptr.vmem [resolvable:$true] %s18
      %21 = dma.hbm_to_vmem [thread:$0]  %s0, 128, %s19, [#allocation4]
    $region5: #{tpu_custom_call.1} parent=1 // pred_fallthru
      _
    // Predicated region
    $region6: #{tpu_custom_call.1} parent=1 // pred_check
      _
    $region7: #{tpu_custom_call.1} parent=1 // pred_check_branch
      %23 = sbr.rel (0) target = $region9
    $region8: #{tpu_custom_call.1} parent=1 // pred_region
      %s25 = ssub.s32 128, 128
      %26 = vsyncadd [#allocation7], %s25
      %s28 = sshll.u32 [#allocation6], 4
      %s29 = int_to_ptr.vmem [resolvable:$true] %s28
      %31 = dma.hbm_to_vmem [thread:$0]  %s1, 128, %s29, [#allocation7]
    $region9: #{tpu_custom_call.1} parent=1 // pred_fallthru
      _
    // Predicated region
    $region10: #{tpu_custom_call.1} parent=1 // pred_check
      _
    $region11: #{tpu_custom_call.1} parent=1 // pred_check_branch
      %33 = sbr.rel (0) target = $region13
    $region12: #{tpu_custom_call.1} parent=1 // pred_region
      _
    $region13: #{tpu_custom_call.1} parent=1 // pred_fallthru
      _
    // Predicated region
    $region14: #{tpu_custom_call.1} parent=1 // pred_check
      _
    $region15: #{tpu_custom_call.1} parent=1 // pred_check_branch
      %35 = sbr.rel (0) target = $region17
    $region16: #{tpu_custom_call.1} parent=1 // pred_region
      _
    $region17: #{tpu_custom_call.1} parent=1 // pred_fallthru
      _
    // Predicated region
    $region18: #{tpu_custom_call.1} parent=1 // pred_check
      _
    $region19: #{tpu_custom_call.1} parent=1 // pred_check_branch
      %37 = sbr.rel (0) target = $region21
    $region20: #{tpu_custom_call.1} parent=1 // pred_region
      %38 = dma.done [#allocation4], 128
    $region21: #{tpu_custom_call.1} parent=1 // pred_fallthru
      _
    // Predicated region
    $region22: #{tpu_custom_call.1} parent=1 // pred_check
      _
    $region23: #{tpu_custom_call.1} parent=1 // pred_check_branch
      %40 = sbr.rel (0) target = $region25
    $region24: #{tpu_custom_call.1} parent=1 // pred_region
      %41 = dma.done [#allocation7], 128
    $region25: #{tpu_custom_call.1} parent=1 // pred_fallthru
      _
    %p42 = scmp.eq.s32.totalorder 0, 0
    // Predicated region
    $region26: #{tpu_custom_call.1} parent=1 // pred_check
      %p43 = pneg %p42
    $region27: #{tpu_custom_call.1} parent=1 // pred_check_branch
      %45 = sbr.rel (%p43) target = $region29
    $region28: #{tpu_custom_call.1} parent=1 // pred_region
      %vm46 = vcmask 0
      %47 = vst.msk [vmem:[#allocation2] sm:$0x1] %vm46, 0.0
    $region29: #{tpu_custom_call.1} parent=1 // pred_fallthru
      _
    %v48 = vld [vmem:[#allocation3] sm:$0xff]
    %v49 = vld [vmem:[#allocation6] sm:$0xff]
    %v50 = vld [vmem:[%s2] sm:$0x1]
    %v51 = vld [vmem:[%s3] sm:$0x1]
    %v52 = vsub.f32 %v48, %v49
    %v53 = vmax.f32 %v48, 0.0
    %v54 = vmul.f32 %v48, %v49
    %v55 = vsub.f32 %v53, %v54
    %v56 = vand.u32 2147483647, %v48
    %v57 = vsub.f32 0.0, %v56
    %v58 = vmul.f32 %v57, 1.442695
    %v59 = vpow.pop %v58
    %v60 = vadd.f32 %v59, 1.0
    %v61 = vlog2.pop %v60
    %v62 = vmul.f32 %v61, 0.6931472
    %v63 = vmul.f32 -0.5, %v59
    %v64 = vadd.f32 %v63, 1.0
    %v65 = vmul.f32 %v64, %v59
    %v66 = vand.u32 2147483647, %v59
    %vm67 = vcmp.lt.f32.partialorder %v66, 0.0004427343
    %v68 = vsel %vm67, %v65, %v62
    %v69 = vadd.f32 %v55, %v68
    %v70 = vld [vmem:[#allocation2] sm:$0x1]
    %v71 = vmul.f32 %v52, %v52
    %v73 = vlaneseq
    %v74 = vshrl.u32 %v73, 7
    %v75 = vsub.s32 0, %v74
    %v76 = vrot.slane %v50, %v75
    %v78 = vmul.f32 %v71, %v76
    %v80 = vlaneseq
    %v81 = vshrl.u32 %v80, 7
    %v82 = vsub.s32 0, %v81
    %v83 = vrot.slane %v51, %v82
    %v85 = vmul.f32 %v69, %v83
    %v86 = vadd.f32 %v78, %v85
    %vm87 = vcmask 64512
    %v88 = vsel %vm87, %v86, 0.0
    %89 = vadd.xlane.f32.xlu0 %v88
    %v90 = vpop.xlane.xlu0 %89
    %v91 = vrot.slane %v90, 4
    %v92 = vadd.f32 %v90, %v91
    %v93 = vrot.slane %v92, 2
    %v94 = vadd.f32 %v92, %v93
    %v95 = vrot.slane %v94, 1
    %v96 = vadd.f32 %v94, %v95
    %s97 = vtos %v96
    %v98 = vstv %s97
    %v99 = vadd.f32 %v70, %v98
    %vm100 = vcmask 0
    %101 = vst.msk [vmem:[#allocation2] sm:$0x1] %vm100, %v99
    // Predicated region
    $region30: #{tpu_custom_call.1} parent=1 // pred_check
      %p102 = pneg %p42
    $region31: #{tpu_custom_call.1} parent=1 // pred_check_branch
      %104 = sbr.rel (%p102) target = $region33
    $region32: #{tpu_custom_call.1} parent=1 // pred_region
      %v105 = vld [vmem:[#allocation2] sm:$0x1]
      %106 = vst.msk [vmem:[#allocation8] sm:$0x1] %vm100, %v105
    $region33: #{tpu_custom_call.1} parent=1 // pred_fallthru
      _
    // Predicated region
    $region34: #{tpu_custom_call.1} parent=1 // pred_check
      _
    $region35: #{tpu_custom_call.1} parent=1 // pred_check_branch
      %108 = sbr.rel (0) target = $region37
    $region36: #{tpu_custom_call.1} parent=1 // pred_region
      %s110 = ssub.s32 16, 16
      %111 = vsyncadd [#allocation5], %s110
      %s113 = sshll.u32 [#allocation8], 4
      %s114 = int_to_ptr.vmem [resolvable:$true] %s113
      %116 = dma.vmem_to_hbm [thread:$0]  %s114, 16, %s4, [#allocation5]
    $region37: #{tpu_custom_call.1} parent=1 // pred_fallthru
      _
    // Predicated region
    $region38: #{tpu_custom_call.1} parent=1 // pred_check
      _
    $region39: #{tpu_custom_call.1} parent=1 // pred_check_branch
      %118 = sbr.rel (0) target = $region41
    $region40: #{tpu_custom_call.1} parent=1 // pred_region
      %119 = dma.done [#allocation5], 16
    $region41: #{tpu_custom_call.1} parent=1 // pred_fallthru
      _
    %120 = vsyncpa [#allocation4], 1
    %121 = vsyncpa [#allocation7], 1
    %122 = vsyncpa [#allocation5], 1

</llo_original>
